<compile_context>
chip_gen: v7x
topology: tpu7x:2x2x1
jax: 0.10.0
libtpu: 0.0.40
codegen_flags: <defaults>
</compile_context>

<pallas_src>
import numpy as np
import jax
import jax.numpy as jnp
from jax.experimental import pallas as pl
from jax.experimental.pallas import tpu as pltpu

K = 3            # number of wander components (module's `k`)
FS = 500.0       # sampling frequency (module's `fs`)
N_WANDER_CH = 12 # only channels 0..11 receive noise (hard-coded in reference)


def _baseline_wander_kernel(noise_ref, x_ref, o_ref):
    """
    noise_ref : VMEM (C, T)      float32  precomputed masked noise (resident)
    x_ref     : VMEM (Bb, C, T)  x.dtype  input block (Bb batch elements)
    o_ref     : VMEM (Bb, C, T)  out dtype output block
    """
    # Pure streaming add; in-kernel casts are free (VPU slack, mem-bound).
    o_ref[...] = (x_ref[...].astype(jnp.float32)
                  + noise_ref[...][None]).astype(o_ref.dtype)


def _tpu_tiling_config():
    """Generation-aware block-size / VMEM-limit / minimum-grid choices."""
    try:
        vmem = int(pltpu.get_tpu_info().vmem_capacity_bytes)
    except Exception:
        vmem = 64 << 20  # conservative fallback (v7x-sized per-TC VMEM)
    if vmem >= (128 << 20):
        # v5e / v6e: single TensorCore, 128 MiB VMEM — go big, no grid minimum.
        return {"target_bytes": 8 << 20, "vmem_limit": 96 << 20, "min_grid": 1}
    # v7x-class: 64 MiB per TC, 2 TCs sharing the grid — cap block size and
    # keep >= ~4 steps per TC so in-DMA / compute / out-DMA stay overlapped.
    return {"target_bytes": 6 << 20, "vmem_limit": 48 << 20, "min_grid": 8}


def _pick_batch_block(B, C, T, *, target_bytes, min_grid):
    """Batch-block size: as many batch elements as fit `target_bytes` of f32
    output, shrunk (when B allows) so the grid has >= min_grid steps.  No
    divisibility requirement — the last block may be ragged (leading dim only,
    so the (8,128) constraint is untouched)."""
    per_elem = C * T * 4  # f32 output bytes per batch element
    bb = max(1, min(B, target_bytes // per_elem))
    if min_grid > 1 and B >= min_grid:
        bb = min(bb, B // min_grid)  # ceil(B/bb) >= min_grid
    return max(1, bb)


def baseline_wander(x, params, amp_channel, *, out_dtype=jnp.float32,
                    donate_x=False, batch_block=None):
    """x: (B, C, T) any float/int dtype; params: (K, 3) [freq, phase, amp];
    amp_channel: (C, 1) float32. Returns (B, C, T) in `out_dtype`
    (default float32, matching the PyTorch module)."""
    B, C, T = x.shape
    out_dtype = jnp.dtype(out_dtype)

    # ---- Hoisted, loop-invariant noise: (C, T) float32, only C*T*4 bytes ----
    t = jnp.arange(T, dtype=jnp.float32)[None, :]                     # (1, T)
    freqs = params[:, 0][:, None]                                     # (K, 1)
    phases = params[:, 1][:, None]
    amps = params[:, 2][:, None]
    noise_t = jnp.sum(
        amps * jnp.cos(jnp.float32(2.0 * np.pi) * freqs * (t / jnp.float32(FS))
                       + phases),
        axis=0, keepdims=True)                                        # (1, T)
    # Fold the "first 12 channels only" mask into the per-channel amplitude.
    ch_mask = (jnp.arange(C) < N_WANDER_CH).astype(jnp.float32)[:, None]
    noise = (amp_channel.astype(jnp.float32) * ch_mask) * noise_t     # (C, T)

    # ---- Coarse batch blocking (generation-aware, ragged last block OK) ----
    cfg = _tpu_tiling_config()
    if batch_block is None:
        Bb = _pick_batch_block(B, C, T, target_bytes=cfg["target_bytes"],
                               min_grid=cfg["min_grid"])
    else:
        Bb = max(1, min(B, int(batch_block)))
    grid = (pl.cdiv(B, Bb),)

    kwargs = {}
    if donate_x and x.dtype == jnp.float32 and out_dtype == jnp.float32:
        # In-place add (x aliased to out). Only valid when dtypes match.
        kwargs["input_output_aliases"] = {1: 0}

    x_bytes = int(jnp.dtype(x.dtype).itemsize)
    out_bytes = int(out_dtype.itemsize)
    cost = pl.CostEstimate(
        flops=B * C * T,
        transcendentals=0,
        bytes_accessed=B * C * T * (x_bytes + out_bytes) + C * T * 4,
    )

    return pl.pallas_call(
        _baseline_wander_kernel,
        out_shape=jax.ShapeDtypeStruct((B, C, T), out_dtype),
        grid=grid,
        in_specs=[
            # Resident noise block: same block index every step -> fetched once.
            pl.BlockSpec((C, T), lambda b: (0, 0)),
            # x in its native dtype; only the batch axis is blocked, so the
            # trailing (C, T) dims equal the full array dims (no (8,128) issue).
            pl.BlockSpec((Bb, C, T), lambda b: (b, 0, 0)),
        ],
        out_specs=pl.BlockSpec((Bb, C, T), lambda b: (b, 0, 0)),
        compiler_params=pltpu.CompilerParams(
            dimension_semantics=("parallel",),
            vmem_limit_bytes=cfg["vmem_limit"],
        ),
        cost_estimate=cost,
        **kwargs,
    )(noise, x)


def make_augmentation_params(key, csz, *, max_amplitude=0.5, min_amplitude=0.0,
                             max_freq=0.2, min_freq=0.01):
    """Deterministic stand-ins for the np.random draws in the PyTorch module."""
    k_ampc, k_amp, k_freq, k_phase = jax.random.split(key, 4)
    amp_channel = 1.0 + 0.5 * jax.random.normal(k_ampc, (csz, 1), jnp.float32)
    amp_general = jax.random.uniform(k_amp, (K,), jnp.float32,
                                     minval=min_amplitude, maxval=max_amplitude)
    freqs = jax.random.uniform(k_freq, (K,), jnp.float32,
                               minval=min_freq, maxval=max_freq)
    phases = jax.random.uniform(k_phase, (K,), jnp.float32,
                                minval=0.0, maxval=2.0 * np.pi)
    params = jnp.stack([freqs, phases, amp_general], axis=-1)  # (K, 3)
    return params, amp_channel


def reference(x, params, amp_channel):
    """Pure-JAX reference mirroring the PyTorch forward (for verification)."""
    B, C, T = x.shape
    t = jnp.arange(T, dtype=jnp.float32)[None, :]                     # (1, T)
    noise_t = jnp.zeros((1, T), jnp.float32)
    for kk in range(K):
        f, r, a = params[kk, 0], params[kk, 1], params[kk, 2]
        noise_t = noise_t + a * jnp.cos(2.0 * np.pi * f * (t / FS) + r)
    noise = amp_channel * noise_t                                     # (C, T)
    out = x.astype(jnp.float32)
    out = out.at[:, :N_WANDER_CH, :].add(noise[:N_WANDER_CH, :][None])
    return out


if __name__ == "__main__":
    # TODO(synk): the module's host-side Bernoulli gate (p > np.random.uniform)
    # is a per-call host decision; with the default p=1.0 the augmentation
    # always applies, which is what this script reproduces.
    key = jax.random.PRNGKey(0)
    k_x, k_params = jax.random.split(key)

    B, C, T = 4, 16, 256  # csz >= 12 required by the reference indexing
    x = jax.random.normal(k_x, (B, C, T), jnp.float32)
    params, amp_channel = make_augmentation_params(k_params, C)
    ref = reference(x, params, amp_channel)

    # 1) float32 input / float32 output path.
    out = jax.block_until_ready(baseline_wander(x, params, amp_channel))
    np.testing.assert_allclose(np.asarray(out), np.asarray(ref),
                               rtol=1e-5, atol=1e-5)

    # 2) bf16 input path exercises the in-kernel cast (no wrapper-side astype).
    x_bf16 = x.astype(jnp.bfloat16)
    out_bf16 = jax.block_until_ready(baseline_wander(x_bf16, params, amp_channel))
    ref_bf16 = reference(x_bf16.astype(jnp.float32), params, amp_channel)
    np.testing.assert_allclose(np.asarray(out_bf16), np.asarray(ref_bf16),
                               rtol=1e-5, atol=1e-5)

    # 3) Ragged grid: B not divisible by the batch block (Pallas masks the
    #    partial last block on the leading dim).
    B2 = 5
    x2 = jax.random.normal(jax.random.PRNGKey(1), (B2, C, T), jnp.float32)
    out2 = jax.block_until_ready(
        baseline_wander(x2, params, amp_channel, batch_block=2))
    ref2 = reference(x2, params, amp_channel)
    np.testing.assert_allclose(np.asarray(out2), np.asarray(ref2),
                               rtol=1e-5, atol=1e-5)

    # 4) Optional bf16 output (roofline lever; semantics change vs. module).
    out_bf16_out = jax.block_until_ready(
        baseline_wander(x, params, amp_channel, out_dtype=jnp.bfloat16))
    np.testing.assert_allclose(np.asarray(out_bf16_out).astype(np.float32),
                               np.asarray(ref), rtol=2e-2, atol=2e-2)

    print("KERNEL_OK")
</pallas_src>

<mosaic_0001>
module attributes {stable_mosaic.version = 11 : i64} {
  func.func @_baseline_wander_kernel(%arg0: i32, %arg1: memref<16x256xf32, #tpu.memory_space<vmem>>, %arg2: memref<4x16x256xf32, #tpu.memory_space<vmem>>, %arg3: memref<4x16x256xf32, #tpu.memory_space<vmem>>) attributes {dimension_semantics = [#tpu.dimension_semantics<parallel>], iteration_bounds = array<i64: 1>, scalar_prefetch = 0 : i64, scratch_operands = 0 : i64, tpu.core_type = #tpu.core_type<tc>, window_params = [{pipeline_mode = #tpu.pipeline_mode<synchronous>, transform_indices = @transform_0, window_bounds = array<i64: 16, 256>}, {transform_indices = @transform_1, window_bounds = array<i64: 4, 16, 256>}, {transform_indices = @transform_2, window_bounds = array<i64: 4, 16, 256>}]} {
    %c0 = arith.constant 0 : index
    %c0_0 = arith.constant 0 : index
    %c0_1 = arith.constant 0 : index
    %0 = vector.load %arg2[%c0, %c0_0, %c0_1] : memref<4x16x256xf32, #tpu.memory_space<vmem>>, vector<4x16x256xf32>
    %c0_2 = arith.constant 0 : index
    %c0_3 = arith.constant 0 : index
    %1 = vector.load %arg1[%c0_2, %c0_3] : memref<16x256xf32, #tpu.memory_space<vmem>>, vector<16x256xf32>
    %2 = vector.shape_cast %1 : vector<16x256xf32> to vector<1x16x256xf32>
    %3 = vector.broadcast %2 : vector<1x16x256xf32> to vector<4x16x256xf32>
    %4 = arith.addf %0, %3 : vector<4x16x256xf32>
    %c0_4 = arith.constant 0 : index
    %c0_5 = arith.constant 0 : index
    %c0_6 = arith.constant 0 : index
    %5 = vector.load %arg3[%c0_4, %c0_5, %c0_6] : memref<4x16x256xf32, #tpu.memory_space<vmem>>, vector<4x16x256xf32>
    tpu.vector_store %arg3[%c0_4, %c0_5, %c0_6], %4 {strides = array<i32>} : memref<4x16x256xf32, #tpu.memory_space<vmem>>, vector<4x16x256xf32>,
    return
  }
  func.func @transform_0(%arg0: i32) -> (i32, i32) {
    %c0_i32 = arith.constant 0 : i32
    %c0_i32_0 = arith.constant 0 : i32
    %c0_i32_1 = arith.constant 0 : i32
    return %c0_i32, %c0_i32_0 : i32, i32
  }
  func.func @transform_1(%arg0: i32) -> (i32, i32, i32) {
    %c0_i32 = arith.constant 0 : i32
    %c0_i32_0 = arith.constant 0 : i32
    %c0_i32_1 = arith.constant 0 : i32
    return %arg0, %c0_i32, %c0_i32_0 : i32, i32, i32
  }
  func.func @transform_2(%arg0: i32) -> (i32, i32, i32) {
    %c0_i32 = arith.constant 0 : i32
    %c0_i32_0 = arith.constant 0 : i32
    %c0_i32_1 = arith.constant 0 : i32
    return %arg0, %c0_i32, %c0_i32_0 : i32, i32, i32
  }
}

</mosaic_0001>

<llo_original>
// kernel: tpu_custom_call.1
$region0: #{tpu_custom_call.1}
  #allocation0 [shape = 'u32[]', space=smem, size = 0x4, offset = 0x4, fixed_abs, tag = 'smem constant byte address 0x4 - core index']
  #allocation1 [shape = 'u32[144,128]{1,0:T(1,128)}', space=vmem, size = 0x12000, scoped, tag = 'internal scratch']
  %s0 = inlined_call_operand.hbm [shape: f32[16,256], index: 0, kind: input, shape index: {}]
  %s1 = inlined_call_operand.hbm [shape: f32[4,16,256], index: 1, kind: input, shape index: {}]
  %s2 = inlined_call_operand.hbm [shape: f32[4,16,256], index: 2, kind: output, shape index: {}]
  %s3 = sld [smem:[#allocation0]]
  $region26: #{tpu_custom_call.1} parent=0
    _
  %s5 = ssub.s32 1, %s3
  %s6 = scalar_select 0, %s5, %s3
  $region1: #{tpu_custom_call.1} parent=0
    #allocation2 [shape = 'u8[16384]{0}', space=vmem, size = 0x4000, scoped, tag = 'input window, operand 0, single buffered']
    #allocation3 [shape = 's32[1]{0}', space=sflag, size = 0x4, scoped, tag = 'scoped memory for tpu_custom_call.1']
    #allocation4 [shape = 's32[1]{0}', space=sflag, size = 0x4, scoped, tag = 'scoped memory for tpu_custom_call.1']
    #allocation5 [shape = 'u8[65536]{0}', space=vmem, size = 0x10000, scoped, tag = 'input window, operand 1, single buffered']
    #allocation6 [shape = 's32[1]{0}', space=sflag, size = 0x4, scoped, tag = 'scoped memory for tpu_custom_call.1']
    #allocation7 [shape = 'u8[65536]{0}', space=vmem, size = 0x10000, scoped, tag = 'output window, operand 0, single buffered']
    %7 = vsyncpa [#allocation3], 0
    %8 = vsyncpa [#allocation6], 0
    %9 = vsyncpa [#allocation4], 0
    // Predicated region
    $region2: #{tpu_custom_call.1} parent=1 // pred_check
      _
    $region3: #{tpu_custom_call.1} parent=1 // pred_check_branch
      %11 = sbr.rel (0) target = $region5
    $region4: #{tpu_custom_call.1} parent=1 // pred_region
      %s13 = ssub.s32 512, 512
      %14 = vsyncadd [#allocation3], %s13
      %s15 = sshll.u32 [#allocation2], 4
      %s16 = int_to_ptr.vmem [resolvable:$true] %s15
      %21 = dma.hbm_to_vmem [thread:$0]  %s0, 512, %s16, [#allocation3], 256, 256, 16
    $region5: #{tpu_custom_call.1} parent=1 // pred_fallthru
      _
    // Predicated region
    $region6: #{tpu_custom_call.1} parent=1 // pred_check
      _
    $region7: #{tpu_custom_call.1} parent=1 // pred_check_branch
      %23 = sbr.rel (0) target = $region9
    $region8: #{tpu_custom_call.1} parent=1 // pred_region
      %s25 = ssub.s32 2048, 2048
      %26 = vsyncadd [#allocation6], %s25
      %s27 = sshll.u32 [#allocation5], 4
      %s28 = int_to_ptr.vmem [resolvable:$true] %s27
      %33 = dma.hbm_to_vmem [thread:$0]  %s1, 2048, %s28, [#allocation6], 256, 256, 16
    $region9: #{tpu_custom_call.1} parent=1 // pred_fallthru
      _
    // Predicated region
    $region10: #{tpu_custom_call.1} parent=1 // pred_check
      _
    $region11: #{tpu_custom_call.1} parent=1 // pred_check_branch
      %35 = sbr.rel (0) target = $region13
    $region12: #{tpu_custom_call.1} parent=1 // pred_region
      %36 = dma.done [#allocation3], 512
    $region13: #{tpu_custom_call.1} parent=1 // pred_fallthru
      _
    // Predicated region
    $region14: #{tpu_custom_call.1} parent=1 // pred_check
      _
    $region15: #{tpu_custom_call.1} parent=1 // pred_check_branch
      %38 = sbr.rel (0) target = $region17
    $region16: #{tpu_custom_call.1} parent=1 // pred_region
      %39 = dma.done [#allocation6], 2048
    $region17: #{tpu_custom_call.1} parent=1 // pred_fallthru
      _
    %v40 = vld [vmem:[#allocation5] sm:$0xff]
    %v41 = vld [vmem:[#allocation5 + $0x8] sm:$0xff]
    %v42 = vld [vmem:[#allocation5 + $0x10] sm:$0xff]
    %v43 = vld [vmem:[#allocation5 + $0x18] sm:$0xff]
    %v44 = vld [vmem:[#allocation5 + $0x20] sm:$0xff]
    %v45 = vld [vmem:[#allocation5 + $0x28] sm:$0xff]
    %v46 = vld [vmem:[#allocation5 + $0x30] sm:$0xff]
    %v47 = vld [vmem:[#allocation5 + $0x38] sm:$0xff]
    %v48 = vld [vmem:[#allocation5 + $0x40] sm:$0xff]
    %v49 = vld [vmem:[#allocation5 + $0x48] sm:$0xff]
    %v50 = vld [vmem:[#allocation5 + $0x50] sm:$0xff]
    %v51 = vld [vmem:[#allocation5 + $0x58] sm:$0xff]
    %v52 = vld [vmem:[#allocation5 + $0x60] sm:$0xff]
    %v53 = vld [vmem:[#allocation5 + $0x68] sm:$0xff]
    %v54 = vld [vmem:[#allocation5 + $0x70] sm:$0xff]
    %v55 = vld [vmem:[#allocation5 + $0x78] sm:$0xff]
    %v56 = vld [vmem:[#allocation2] sm:$0xff]
    %v57 = vld [vmem:[#allocation2 + $0x8] sm:$0xff]
    %v58 = vld [vmem:[#allocation2 + $0x10] sm:$0xff]
    %v59 = vld [vmem:[#allocation2 + $0x18] sm:$0xff]
    %v60 = vadd.f32 %v40, %v56
    %v61 = vadd.f32 %v41, %v57
    %v62 = vadd.f32 %v42, %v58
    %v63 = vadd.f32 %v43, %v59
    %v64 = vadd.f32 %v44, %v56
    %v65 = vadd.f32 %v45, %v57
    %v66 = vadd.f32 %v46, %v58
    %v67 = vadd.f32 %v47, %v59
    %v68 = vadd.f32 %v48, %v56
    %v69 = vadd.f32 %v49, %v57
    %v70 = vadd.f32 %v50, %v58
    %v71 = vadd.f32 %v51, %v59
    %v72 = vadd.f32 %v52, %v56
    %v73 = vadd.f32 %v53, %v57
    %v74 = vadd.f32 %v54, %v58
    %v75 = vadd.f32 %v55, %v59
    %76 = vst [vmem:[#allocation7] sm:$0xff] %v60
    %77 = vst [vmem:[#allocation7 + $0x8] sm:$0xff] %v61
    %78 = vst [vmem:[#allocation7 + $0x10] sm:$0xff] %v62
    %79 = vst [vmem:[#allocation7 + $0x18] sm:$0xff] %v63
    %80 = vst [vmem:[#allocation7 + $0x20] sm:$0xff] %v64
    %81 = vst [vmem:[#allocation7 + $0x28] sm:$0xff] %v65
    %82 = vst [vmem:[#allocation7 + $0x30] sm:$0xff] %v66
    %83 = vst [vmem:[#allocation7 + $0x38] sm:$0xff] %v67
    %84 = vst [vmem:[#allocation7 + $0x40] sm:$0xff] %v68
    %85 = vst [vmem:[#allocation7 + $0x48] sm:$0xff] %v69
    %86 = vst [vmem:[#allocation7 + $0x50] sm:$0xff] %v70
    %87 = vst [vmem:[#allocation7 + $0x58] sm:$0xff] %v71
    %88 = vst [vmem:[#allocation7 + $0x60] sm:$0xff] %v72
    %89 = vst [vmem:[#allocation7 + $0x68] sm:$0xff] %v73
    %90 = vst [vmem:[#allocation7 + $0x70] sm:$0xff] %v74
    %91 = vst [vmem:[#allocation7 + $0x78] sm:$0xff] %v75
    // Predicated region
    $region18: #{tpu_custom_call.1} parent=1 // pred_check
      _
    $region19: #{tpu_custom_call.1} parent=1 // pred_check_branch
      %93 = sbr.rel (0) target = $region21
    $region20: #{tpu_custom_call.1} parent=1 // pred_region
      %s95 = ssub.s32 2048, 2048
      %96 = vsyncadd [#allocation4], %s95
      %s97 = sshll.u32 [#allocation7], 4
      %s98 = int_to_ptr.vmem [resolvable:$true] %s97
      %103 = dma.vmem_to_hbm [thread:$0]  %s98, 2048, %s2, [#allocation4], 256, 256, 16
    $region21: #{tpu_custom_call.1} parent=1 // pred_fallthru
      _
    // Predicated region
    $region22: #{tpu_custom_call.1} parent=1 // pred_check
      _
    $region23: #{tpu_custom_call.1} parent=1 // pred_check_branch
      %105 = sbr.rel (0) target = $region25
    $region24: #{tpu_custom_call.1} parent=1 // pred_region
      %106 = dma.done [#allocation4], 2048
    $region25: #{tpu_custom_call.1} parent=1 // pred_fallthru
      _
    %107 = vsyncpa [#allocation3], 1
    %108 = vsyncpa [#allocation6], 1
    %109 = vsyncpa [#allocation4], 1

</llo_original>
